<compile_context>
chip_gen: v7x
topology: tpu7x:2x2x1
jax: 0.10.0
libtpu: 0.0.40
codegen_flags: <defaults>
</compile_context>

<pallas_src>
import math

import jax
import jax.numpy as jnp
from jax import lax
from jax.experimental import pallas as pl
from jax.experimental.pallas import tpu as pltpu


def _round_up(a: int, b: int) -> int:
    return (a + b - 1) // b * b


def _cdiv(a: int, b: int) -> int:
    return (a + b - 1) // b


def _stl_kernel(xt_ref, wqkT_ref, bqk_ref, wvoT_ref, bo_ref, gmask_ref, o_ref):
    """One batch tile of the folded StyleTokenLayer, batch-on-lanes layout.

    xt_ref    : (C, Bt)    query rows for this tile, transposed (batch on lanes)
    wqkT_ref  : (HT, C)    (scale * Wq.T @ K_rep.T).T  -- folded q-proj + key dot
    bqk_ref   : (HT, 1)    scale * bq @ K_rep.T, as a column
    wvoT_ref  : (C, HT)    (V_rep @ Wo.T).T            -- folded value read + out-proj
    bo_ref    : (C, 1)     output-projection bias, as a column
    gmask_ref : (HT, HT)   per-head group-sum indicator: (i//T == j//T)
    o_ref     : (C, Bt)    output rows, transposed
    """
    f32 = jnp.float32
    xt = xt_ref[...].astype(f32)                                               # (C, Bt)

    # scores[h*T + t, b] = scale * <q_head_h[b], k_head_h[t]>   (single matmul)
    s = jnp.dot(wqkT_ref[...], xt, preferred_element_type=f32) + bqk_ref[...]  # (HT, Bt)

    # Per-head softmax over the token axis (rows grouped by head).  The
    # per-column max over ALL heads is subtracted: each head's softmax is
    # shift-invariant so this is exact; with tanh-bounded embeddings and small
    # projection weights the cross-head score spread is orders of magnitude
    # below the ~88 range where f32 exp() underflow could zero a head's denom.
    m = jnp.max(s, axis=0, keepdims=True)                                      # (1, Bt)
    e = jnp.exp(s - m)
    denom = jnp.dot(gmask_ref[...], e, preferred_element_type=f32)             # (HT, Bt)
    # EUP reciprocal: softmax rows sum to 1 +/- ~1e-4, inside the tolerance.
    p = e * pl.reciprocal(denom, approx=True)

    y = jnp.dot(wvoT_ref[...], p, preferred_element_type=f32) + bo_ref[...]    # (C, Bt)
    o_ref[...] = y.astype(o_ref.dtype)


def style_token_layer(x, embeddings, params, *, n_heads: int, b_tile_max: int = 512):
    """x: (B, C) global reference embedding. Returns (B, C, 1) like PyTorch."""
    B, C = x.shape
    n_tokens = embeddings.shape[1]
    assert C % n_heads == 0
    kc = C // n_heads
    HT = n_heads * n_tokens
    hp = lax.Precision.HIGHEST
    f32 = jnp.float32

    # ---- one-time, batch-invariant algebraic fold (tiny XLA ops) -----------
    emb = jnp.tanh(embeddings.T).astype(f32)                                   # (T, C)
    k = jnp.dot(emb, params["wk"].T, precision=hp) + params["bk"]              # (T, C)
    v = jnp.dot(emb, params["wv"].T, precision=hp) + params["bv"]              # (T, C)

    # Replicate K/V once per head and zero channels outside each head's block,
    # so a single contraction over C yields all heads' scores / outputs.
    hmask = (jnp.arange(HT)[:, None] // n_tokens ==
             jnp.arange(C)[None, :] // kc).astype(f32)                         # (HT, C)
    k_rep = jnp.tile(k, (n_heads, 1)) * hmask                                  # (HT, C)
    v_rep = jnp.tile(v, (n_heads, 1)) * hmask                                  # (HT, C)

    scale = 1.0 / math.sqrt(kc)
    # W_qk.T = scale * K_rep @ Wq  (HT, C);  b_qk = scale * K_rep @ bq  (HT, 1)
    w_qk_t = scale * jnp.dot(k_rep, params["wq"], precision=hp)                # (HT, C)
    b_qk = (scale * jnp.dot(k_rep, params["bq"], precision=hp)).reshape(HT, 1)
    # W_vo.T = Wo @ V_rep.T  (C, HT)
    w_vo_t = jnp.dot(params["wo"], v_rep.T, precision=hp)                      # (C, HT)
    b_o = params["bo"].reshape(C, 1)

    gmask = (jnp.arange(HT)[:, None] // n_tokens ==
             jnp.arange(HT)[None, :] // n_tokens).astype(f32)                  # (HT, HT)

    # ---- batch-on-lanes tiling ----------------------------------------------
    # Pad B to a full vreg of lanes; for large B use lane-dense tiles (multiple
    # of 128) with an EVEN step count so v7x's two TensorCores share the grid.
    b_pad = _round_up(max(B, 1), 128)
    if b_pad <= b_tile_max:
        b_tile = b_pad                                   # single step; block == full array
    else:
        n_steps = 2 * _cdiv(b_pad, 2 * b_tile_max)       # even count (v7x: 2 TCs)
        b_tile = _round_up(_cdiv(b_pad, n_steps), 128)
        b_pad = b_tile * n_steps
    x_t = jnp.zeros((C, b_pad), x.dtype).at[:, :B].set(x.T)

    def const(shape):  # whole-array block, identical for every grid step
        return pl.BlockSpec(shape, lambda i: (0, 0))

    out_t = pl.pallas_call(
        _stl_kernel,
        out_shape=jax.ShapeDtypeStruct((C, b_pad), x.dtype),
        grid=(b_pad // b_tile,),
        in_specs=[
            pl.BlockSpec((C, b_tile), lambda i: (0, i)),   # x tile (transposed)
            const((HT, C)), const((HT, 1)),                # folded query/key weights + bias
            const((C, HT)), const((C, 1)),                 # folded value/out weights + bias
            const((HT, HT)),                               # per-head group-sum indicator
        ],
        out_specs=pl.BlockSpec((C, b_tile), lambda i: (0, i)),
        compiler_params=pltpu.CompilerParams(dimension_semantics=("parallel",)),
    )(x_t, w_qk_t, b_qk, w_vo_t, b_o, gmask)

    return out_t[:, :B].T[:, :, None]   # back to PyTorch layout (B, C, 1)


def _reference(x, embeddings, params, *, n_heads: int):
    """Pure-JAX reference mirroring the PyTorch module (highest precision)."""
    B, C = x.shape
    kc = C // n_heads
    hp = lax.Precision.HIGHEST
    emb = jnp.tanh(embeddings)                                          # (C, n_tokens)
    q = jnp.dot(x, params["wq"].T, precision=hp) + params["bq"]         # (B, C)
    k = jnp.dot(emb.T, params["wk"].T, precision=hp) + params["bk"]     # (T, C)
    v = jnp.dot(emb.T, params["wv"].T, precision=hp) + params["bv"]     # (T, C)
    T = k.shape[0]
    qh = q.reshape(B, 1, n_heads, kc).transpose(0, 2, 1, 3)             # (B, H, 1, kc)
    kh = jnp.broadcast_to(k.reshape(1, T, n_heads, kc).transpose(0, 2, 1, 3),
                          (B, n_heads, T, kc))
    vh = jnp.broadcast_to(v.reshape(1, T, n_heads, kc).transpose(0, 2, 1, 3),
                          (B, n_heads, T, kc))
    s = jnp.einsum("bhqd,bhkd->bhqk", qh / math.sqrt(kc), kh, precision=hp)
    p = jax.nn.softmax(s, axis=-1)
    o = jnp.einsum("bhqk,bhkd->bhqd", p, vh, precision=hp)              # (B, H, 1, kc)
    o = o.transpose(0, 2, 1, 3).reshape(B, C)                           # heads concat on channels
    y = jnp.dot(o, params["wo"].T, precision=hp) + params["bo"]         # (B, C)
    return y[:, :, None]                                                # (B, C, 1)


if __name__ == "__main__":
    # Shapes implied by the module: hidden_channels=32, n_tokens=8, n_heads=4.
    B, C, n_tokens, n_heads = 2, 32, 8, 4
    key = jax.random.PRNGKey(0)
    ks = jax.random.split(key, 10)

    # nn.Parameter embeddings ~ N(0, 0.5)
    embeddings = 0.5 * jax.random.normal(ks[0], (C, n_tokens), jnp.float32)

    # conv1d(k=1) weights: xavier_uniform, biases: uniform(-1/sqrt(C), 1/sqrt(C))
    def xavier(k, shape):
        lim = math.sqrt(6.0 / (shape[0] + shape[1]))
        return jax.random.uniform(k, shape, jnp.float32, -lim, lim)

    blim = 1.0 / math.sqrt(C)
    params = {
        "wq": xavier(ks[1], (C, C)), "bq": jax.random.uniform(ks[2], (C,), jnp.float32, -blim, blim),
        "wk": xavier(ks[3], (C, C)), "bk": jax.random.uniform(ks[4], (C,), jnp.float32, -blim, blim),
        "wv": xavier(ks[5], (C, C)), "bv": jax.random.uniform(ks[6], (C,), jnp.float32, -blim, blim),
        "wo": xavier(ks[7], (C, C)), "bo": jax.random.uniform(ks[8], (C,), jnp.float32, -blim, blim),
    }

    x = jax.random.normal(ks[9], (B, C), jnp.float32)

    out = style_token_layer(x, embeddings, params, n_heads=n_heads)
    out = jax.block_until_ready(out)

    ref = _reference(x, embeddings, params, n_heads=n_heads)
    assert out.shape == (B, C, 1), out.shape
    # Tolerance covers default-vs-highest f32 matmul precision plus the
    # approx-EUP reciprocal in the softmax (relative error ~1e-3).
    assert jnp.allclose(out, ref, atol=1e-2, rtol=1e-2), float(jnp.max(jnp.abs(out - ref)))

    print("KERNEL_OK")
</pallas_src>

<mosaic_0001>
module attributes {stable_mosaic.version = 11 : i64} {
  func.func @_stl_kernel(%arg0: i32, %arg1: memref<32x128xf32, #tpu.memory_space<vmem>>, %arg2: memref<32x32xf32, #tpu.memory_space<vmem>>, %arg3: memref<32x1xf32, #tpu.memory_space<vmem>>, %arg4: memref<32x32xf32, #tpu.memory_space<vmem>>, %arg5: memref<32x1xf32, #tpu.memory_space<vmem>>, %arg6: memref<32x32xf32, #tpu.memory_space<vmem>>, %arg7: memref<32x128xf32, #tpu.memory_space<vmem>>) attributes {dimension_semantics = [#tpu.dimension_semantics<parallel>], iteration_bounds = array<i64: 1>, scalar_prefetch = 0 : i64, scratch_operands = 0 : i64, tpu.core_type = #tpu.core_type<tc>, window_params = [{transform_indices = @transform_0, window_bounds = array<i64: 32, 128>}, {pipeline_mode = #tpu.pipeline_mode<synchronous>, transform_indices = @transform_1, window_bounds = array<i64: 32, 32>}, {pipeline_mode = #tpu.pipeline_mode<synchronous>, transform_indices = @transform_2, window_bounds = array<i64: 32, 1>}, {pipeline_mode = #tpu.pipeline_mode<synchronous>, transform_indices = @transform_3, window_bounds = array<i64: 32, 32>}, {pipeline_mode = #tpu.pipeline_mode<synchronous>, transform_indices = @transform_4, window_bounds = array<i64: 32, 1>}, {pipeline_mode = #tpu.pipeline_mode<synchronous>, transform_indices = @transform_5, window_bounds = array<i64: 32, 32>}, {transform_indices = @transform_6, window_bounds = array<i64: 32, 128>}]} {
    %c0 = arith.constant 0 : index
    %c0_0 = arith.constant 0 : index
    %0 = vector.load %arg1[%c0, %c0_0] : memref<32x128xf32, #tpu.memory_space<vmem>>, vector<32x128xf32>
    %c0_1 = arith.constant 0 : index
    %c0_2 = arith.constant 0 : index
    %1 = vector.load %arg2[%c0_1, %c0_2] : memref<32x32xf32, #tpu.memory_space<vmem>>, vector<32x32xf32>
    %cst = arith.constant dense<0.000000e+00> : vector<32x128xf32>
    %2 = tpu.matmul %1, %0, %cst {dimension_numbers = #tpu.dot_dimension_numbers<[1], [0], [0], [1], [0, 0, 1, 1], [], []>} : vector<32x32xf32>, vector<32x128xf32>, vector<32x128xf32> -> vector<32x128xf32>
    %c0_3 = arith.constant 0 : index
    %c0_4 = arith.constant 0 : index
    %3 = vector.load %arg3[%c0_3, %c0_4] : memref<32x1xf32, #tpu.memory_space<vmem>>, vector<32x1xf32>
    %4 = vector.broadcast %3 : vector<32x1xf32> to vector<32x128xf32>
    %5 = arith.addf %2, %4 : vector<32x128xf32>
    %cst_5 = arith.constant dense<0xFF800000> : vector<128xf32>
    %6 = vector.multi_reduction <maximumf>, %5, %cst_5 [0] : vector<32x128xf32> to vector<128xf32>
    %7 = vector.shape_cast %6 : vector<128xf32> to vector<1x128xf32>
    %8 = vector.broadcast %7 : vector<1x128xf32> to vector<32x128xf32>
    %9 = arith.subf %5, %8 : vector<32x128xf32>
    %10 = math.exp %9 : vector<32x128xf32>
    %c0_6 = arith.constant 0 : index
    %c0_7 = arith.constant 0 : index
    %11 = vector.load %arg6[%c0_6, %c0_7] : memref<32x32xf32, #tpu.memory_space<vmem>>, vector<32x32xf32>
    %cst_8 = arith.constant dense<0.000000e+00> : vector<32x128xf32>
    %12 = tpu.matmul %11, %10, %cst_8 {dimension_numbers = #tpu.dot_dimension_numbers<[1], [0], [0], [1], [0, 0, 1, 1], [], []>} : vector<32x32xf32>, vector<32x128xf32>, vector<32x128xf32> -> vector<32x128xf32>
    %13 = tpu.reciprocal %12 {approx = true} : vector<32x128xf32> -> vector<32x128xf32>
    %14 = arith.mulf %10, %13 : vector<32x128xf32>
    %c0_9 = arith.constant 0 : index
    %c0_10 = arith.constant 0 : index
    %15 = vector.load %arg4[%c0_9, %c0_10] : memref<32x32xf32, #tpu.memory_space<vmem>>, vector<32x32xf32>
    %cst_11 = arith.constant dense<0.000000e+00> : vector<32x128xf32>
    %16 = tpu.matmul %15, %14, %cst_11 {dimension_numbers = #tpu.dot_dimension_numbers<[1], [0], [0], [1], [0, 0, 1, 1], [], []>} : vector<32x32xf32>, vector<32x128xf32>, vector<32x128xf32> -> vector<32x128xf32>
    %c0_12 = arith.constant 0 : index
    %c0_13 = arith.constant 0 : index
    %17 = vector.load %arg5[%c0_12, %c0_13] : memref<32x1xf32, #tpu.memory_space<vmem>>, vector<32x1xf32>
    %18 = vector.broadcast %17 : vector<32x1xf32> to vector<32x128xf32>
    %19 = arith.addf %16, %18 : vector<32x128xf32>
    %c0_14 = arith.constant 0 : index
    %c0_15 = arith.constant 0 : index
    %20 = vector.load %arg7[%c0_14, %c0_15] : memref<32x128xf32, #tpu.memory_space<vmem>>, vector<32x128xf32>
    tpu.vector_store %arg7[%c0_14, %c0_15], %19 {strides = array<i32>} : memref<32x128xf32, #tpu.memory_space<vmem>>, vector<32x128xf32>,
    return
  }
  func.func @transform_0(%arg0: i32) -> (i32, i32) {
    %c0_i32 = arith.constant 0 : i32
    %c0_i32_0 = arith.constant 0 : i32
    return %c0_i32, %arg0 : i32, i32
  }
  func.func @transform_1(%arg0: i32) -> (i32, i32) {
    %c0_i32 = arith.constant 0 : i32
    %c0_i32_0 = arith.constant 0 : i32
    %c0_i32_1 = arith.constant 0 : i32
    return %c0_i32, %c0_i32_0 : i32, i32
  }
  func.func @transform_2(%arg0: i32) -> (i32, i32) {
    %c0_i32 = arith.constant 0 : i32
    %c0_i32_0 = arith.constant 0 : i32
    %c0_i32_1 = arith.constant 0 : i32
    return %c0_i32, %c0_i32_0 : i32, i32
  }
  func.func @transform_3(%arg0: i32) -> (i32, i32) {
    %c0_i32 = arith.constant 0 : i32
    %c0_i32_0 = arith.constant 0 : i32
    %c0_i32_1 = arith.constant 0 : i32
    return %c0_i32, %c0_i32_0 : i32, i32
  }
  func.func @transform_4(%arg0: i32) -> (i32, i32) {
    %c0_i32 = arith.constant 0 : i32
    %c0_i32_0 = arith.constant 0 : i32
    %c0_i32_1 = arith.constant 0 : i32
    return %c0_i32, %c0_i32_0 : i32, i32
  }
  func.func @transform_5(%arg0: i32) -> (i32, i32) {
    %c0_i32 = arith.constant 0 : i32
    %c0_i32_0 = arith.constant 0 : i32
    %c0_i32_1 = arith.constant 0 : i32
    return %c0_i32, %c0_i32_0 : i32, i32
  }
  func.func @transform_6(%arg0: i32) -> (i32, i32) {
    %c0_i32 = arith.constant 0 : i32
    %c0_i32_0 = arith.constant 0 : i32
    return %c0_i32, %arg0 : i32, i32
  }
}

</mosaic_0001>

<llo_original>
// kernel: tpu_custom_call.1
$region0: #{tpu_custom_call.1}
  #allocation0 [shape = 'u32[]', space=smem, size = 0x4, offset = 0x4, fixed_abs, tag = 'smem constant byte address 0x4 - core index']
  #allocation1 [shape = 'u32[144,128]{1,0:T(1,128)}', space=vmem, size = 0x12000, scoped, tag = 'internal scratch']
  %s0 = inlined_call_operand.vmem [shape: f32[32,128], index: 0, kind: input, shape index: {}]
  %s1 = inlined_call_operand.vmem [shape: f32[32,32], index: 1, kind: input, shape index: {}]
  %s2 = inlined_call_operand.vmem [shape: f32[32,1], index: 2, kind: input, shape index: {}]
  %s3 = inlined_call_operand.hbm [shape: f32[32,32], index: 3, kind: input, shape index: {}]
  %s4 = inlined_call_operand.vmem [shape: f32[32,1], index: 4, kind: input, shape index: {}]
  %s5 = inlined_call_operand.hbm [shape: f32[32,32], index: 5, kind: input, shape index: {}]
  %s6 = inlined_call_operand.hbm [shape: f32[32,128], index: 6, kind: output, shape index: {}]
  %s7 = sld [smem:[#allocation0]]
  $region42: #{tpu_custom_call.1} parent=0
    _
  %s9 = ssub.s32 1, %s7
  %s10 = scalar_select 0, %s9, %s7
  $region1: #{tpu_custom_call.1} parent=0
    #allocation2 [shape = 'u8[16384]{0}', space=vmem, size = 0x4000, scoped, tag = 'input window, operand 3, single buffered']
    #allocation3 [shape = 's32[1]{0}', space=sflag, size = 0x4, scoped, tag = 'scoped memory for tpu_custom_call.1']
    #allocation4 [shape = 's32[1]{0}', space=sflag, size = 0x4, scoped, tag = 'scoped memory for tpu_custom_call.1']
    #allocation5 [shape = 'u8[16384]{0}', space=vmem, size = 0x4000, scoped, tag = 'input window, operand 5, single buffered']
    #allocation6 [shape = 's32[1]{0}', space=sflag, size = 0x4, scoped, tag = 'scoped memory for tpu_custom_call.1']
    #allocation7 [shape = 'u8[16384]{0}', space=vmem, size = 0x4000, scoped, tag = 'output window, operand 0, single buffered']
    %11 = vsyncpa [#allocation3], 0
    %12 = vsyncpa [#allocation6], 0
    %13 = vsyncpa [#allocation4], 0
    // Predicated region
    $region2: #{tpu_custom_call.1} parent=1 // pred_check
      _
    $region3: #{tpu_custom_call.1} parent=1 // pred_check_branch
      %15 = sbr.rel (0) target = $region5
    $region4: #{tpu_custom_call.1} parent=1 // pred_region
      _
    $region5: #{tpu_custom_call.1} parent=1 // pred_fallthru
      _
    // Predicated region
    $region6: #{tpu_custom_call.1} parent=1 // pred_check
      _
    $region7: #{tpu_custom_call.1} parent=1 // pred_check_branch
      %17 = sbr.rel (0) target = $region9
    $region8: #{tpu_custom_call.1} parent=1 // pred_region
      _
    $region9: #{tpu_custom_call.1} parent=1 // pred_fallthru
      _
    // Predicated region
    $region10: #{tpu_custom_call.1} parent=1 // pred_check
      _
    $region11: #{tpu_custom_call.1} parent=1 // pred_check_branch
      %19 = sbr.rel (0) target = $region13
    $region12: #{tpu_custom_call.1} parent=1 // pred_region
      _
    $region13: #{tpu_custom_call.1} parent=1 // pred_fallthru
      _
    // Predicated region
    $region14: #{tpu_custom_call.1} parent=1 // pred_check
      _
    $region15: #{tpu_custom_call.1} parent=1 // pred_check_branch
      %21 = sbr.rel (0) target = $region17
    $region16: #{tpu_custom_call.1} parent=1 // pred_region
      %s23 = ssub.s32 512, 512
      %24 = vsyncadd [#allocation3], %s23
      %s25 = sshll.u32 [#allocation2], 4
      %s26 = int_to_ptr.vmem [resolvable:$true] %s25
      %31 = dma.hbm_to_vmem [thread:$0]  %s3, 512, %s26, [#allocation3], 128, 128, 8
    $region17: #{tpu_custom_call.1} parent=1 // pred_fallthru
      _
    // Predicated region
    $region18: #{tpu_custom_call.1} parent=1 // pred_check
      _
    $region19: #{tpu_custom_call.1} parent=1 // pred_check_branch
      %33 = sbr.rel (0) target = $region21
    $region20: #{tpu_custom_call.1} parent=1 // pred_region
      _
    $region21: #{tpu_custom_call.1} parent=1 // pred_fallthru
      _
    // Predicated region
    $region22: #{tpu_custom_call.1} parent=1 // pred_check
      _
    $region23: #{tpu_custom_call.1} parent=1 // pred_check_branch
      %35 = sbr.rel (0) target = $region25
    $region24: #{tpu_custom_call.1} parent=1 // pred_region
      %s37 = ssub.s32 512, 512
      %38 = vsyncadd [#allocation6], %s37
      %s39 = sshll.u32 [#allocation5], 4
      %s40 = int_to_ptr.vmem [resolvable:$true] %s39
      %45 = dma.hbm_to_vmem [thread:$0]  %s5, 512, %s40, [#allocation6], 128, 128, 8
    $region25: #{tpu_custom_call.1} parent=1 // pred_fallthru
      _
    // Predicated region
    $region26: #{tpu_custom_call.1} parent=1 // pred_check
      _
    $region27: #{tpu_custom_call.1} parent=1 // pred_check_branch
      %47 = sbr.rel (0) target = $region29
    $region28: #{tpu_custom_call.1} parent=1 // pred_region
      %48 = dma.done [#allocation3], 512
    $region29: #{tpu_custom_call.1} parent=1 // pred_fallthru
      _
    // Predicated region
    $region30: #{tpu_custom_call.1} parent=1 // pred_check
      _
    $region31: #{tpu_custom_call.1} parent=1 // pred_check_branch
      %50 = sbr.rel (0) target = $region33
    $region32: #{tpu_custom_call.1} parent=1 // pred_region
      %51 = dma.done [#allocation6], 512
    $region33: #{tpu_custom_call.1} parent=1 // pred_fallthru
      _
    %v52 = vld [vmem:[%s0] sm:$0xff]
    %v53 = vld [vmem:[%s0 + $0x8] sm:$0xff]
    %v54 = vld [vmem:[%s0 + $0x10] sm:$0xff]
    %v55 = vld [vmem:[%s0 + $0x18] sm:$0xff]
    %v56 = vld [vmem:[%s1] sm:$0xff]
    %v57 = vld [vmem:[%s1 + $0x8] sm:$0xff]
    %v58 = vld [vmem:[%s1 + $0x10] sm:$0xff]
    %v59 = vld [vmem:[%s1 + $0x18] sm:$0xff]
    %v60 = vld [vmem:[%s2] sm:$0xff]
    %v61 = vld [vmem:[%s2 + $0x8] sm:$0xff]
    %v62 = vld [vmem:[%s2 + $0x10] sm:$0xff]
    %v63 = vld [vmem:[%s2 + $0x18] sm:$0xff]
    %65 = vset.pattern.permute.xlu0 0
    %66 = vperm.xlu0 %65, %v60
    %v67 = vpop.permute.xlu0 %66
    %70 = vset.pattern.permute.xlu0 0
    %71 = vperm.xlu0 %70, %v61
    %v72 = vpop.permute.xlu0 %71
    %75 = vset.pattern.permute.xlu0 0
    %76 = vperm.xlu0 %75, %v62
    %v77 = vpop.permute.xlu0 %76
    %80 = vset.pattern.permute.xlu0 0
    %81 = vperm.xlu0 %80, %v63
    %v82 = vpop.permute.xlu0 %81
    %vm84 = vcmask 261120
    %v86 = vsel %vm84, %v56, 0
    %v89 = vsel %vm84, %v57, 0
    %v92 = vsel %vm84, %v58, 0
    %v95 = vsel %vm84, %v59, 0
    %97 = vmatprep.subr.mxu0 0.0
    %98 = vmatpush1.msra.mxu0 %v52
    %99 = vmatprep.subr.mxu0 0.0
    %100 = vmatpush1.msra.mxu0 %v53
    %101 = vmatprep.subr.mxu0 0.0
    %102 = vmatpush1.msra.mxu0 %v54
    %103 = vmatprep.subr.mxu0 0.0
    %104 = vmatpush1.msra.mxu0 %v55
    %105 = vmatprep.subr.mxu0 0.0
    %106 = vmatpush1.msra.mxu0 0.0
    %107 = vmatprep.subr.mxu0 0.0
    %108 = vmatpush1.msra.mxu0 0.0
    %109 = vmatprep.subr.mxu0 0.0
    %110 = vmatpush1.msra.mxu0 0.0
    %111 = vmatprep.subr.mxu0 0.0
    %112 = vmatpush1.msra.mxu0 0.0
    %113 = vmatprep.subr.mxu0 0.0
    %114 = vmatpush1.msra.mxu0 0.0
    %115 = vmatprep.subr.mxu0 0.0
    %116 = vmatpush1.msra.mxu0 0.0
    %117 = vmatprep.subr.mxu0 0.0
    %118 = vmatpush1.msra.mxu0 0.0
    %119 = vmatprep.subr.mxu0 0.0
    %120 = vmatpush1.msra.mxu0 0.0
    %121 = vmatprep.subr.mxu0 0.0
    %122 = vmatpush1.msra.mxu0 0.0
    %123 = vmatprep.subr.mxu0 0.0
    %124 = vmatpush1.msra.mxu0 0.0
    %125 = vmatprep.subr.mxu0 0.0
    %126 = vmatpush1.msra.mxu0 0.0
    %127 = vmatprep.subr.mxu0 0.0
    %128 = vmatpush1.msra.mxu0 0.0
    %129 = vmatprep.subr.mxu0 0.0
    %130 = vmatpush1.msra.mxu0 0.0
    %131 = vmatprep.subr.mxu0 0.0
    %132 = vmatpush1.msra.mxu0 0.0
    %133 = vmatprep.subr.mxu0 0.0
    %134 = vmatpush1.msra.mxu0 0.0
    %135 = vmatprep.subr.mxu0 0.0
    %136 = vmatpush1.msra.mxu0 0.0
    %137 = vmatprep.subr.mxu0 0.0
    %138 = vmatpush1.msra.mxu0 0.0
    %139 = vmatprep.subr.mxu0 0.0
    %140 = vmatpush1.msra.mxu0 0.0
    %141 = vmatprep.subr.mxu0 0.0
    %142 = vmatpush1.msra.mxu0 0.0
    %143 = vmatprep.subr.mxu0 0.0
    %144 = vmatpush1.msra.mxu0 0.0
    %145 = vmatprep.subr.mxu0 0.0
    %146 = vmatpush1.msra.mxu0 0.0
    %147 = vmatprep.subr.mxu0 0.0
    %148 = vmatpush1.msra.mxu0 0.0
    %149 = vmatprep.subr.mxu0 0.0
    %150 = vmatpush1.msra.mxu0 0.0
    %151 = vmatprep.subr.mxu0 0.0
    %152 = vmatpush1.msra.mxu0 0.0
    %153 = vmatprep.subr.mxu0 0.0
    %154 = vmatpush1.msra.mxu0 0.0
    %155 = vmatprep.subr.mxu0 0.0
    %156 = vmatpush1.msra.mxu0 0.0
    %157 = vmatprep.subr.mxu0 0.0
    %158 = vmatpush1.msra.mxu0 0.0
    %159 = vmatprep.subr.mxu0 0.0
    %160 = vmatpush1.msra.mxu0 0.0
    %161 = vmatprep.mubr.f32.mxu0 0.0
    %162 = vmatmul.mubr.f32.gmra.mrb[0].mxu0 %v86
    %v163 = vpop.f32.mrb[0].mxu0
    %v164 = vadd.f32 %v67, %v163
    %v165 = vpop.f32.mrb[0].mxu0
    %166 = vmatprep.mubr.f32.mxu0 0.0
    %167 = vmatmul.mubr.f32.gmra.mrb[0].mxu0 %v89
    %v168 = vpop.f32.mrb[0].mxu0
    %v169 = vadd.f32 %v72, %v168
    %v170 = vpop.f32.mrb[0].mxu0
    %171 = vmatprep.mubr.f32.mxu0 0.0
    %172 = vmatmul.mubr.f32.gmra.mrb[0].mxu0 %v92
    %v173 = vpop.f32.mrb[0].mxu0
    %v174 = vadd.f32 %v77, %v173
    %v175 = vpop.f32.mrb[0].mxu0
    %176 = vmatprep.mubr.f32.mxu0 0.0
    %177 = vmatmul.mubr.f32.gmra.mrb[0].mxu0 %v95
    %v178 = vpop.f32.mrb[0].mxu0
    %v179 = vadd.f32 %v82, %v178
    %v180 = vpop.f32.mrb[0].mxu0
    %181 = vdwg.mxu0
    %v182 = vmax.f32 %v164, %v169
    %v183 = vmax.f32 %v174, %v179
    %v184 = vmax.f32 %v182, %v183
    %v185 = vrot.slane %v184, 4
    %v186 = vmax.f32 %v184, %v185
    %v187 = vrot.slane %v186, 2
    %v188 = vmax.f32 %v186, %v187
    %v189 = vrot.slane %v188, 1
    %v190 = vmax.f32 %v188, %v189
    %v191 = vsub.f32 %v164, %v190
    %v192 = vsub.f32 %v169, %v190
    %v193 = vsub.f32 %v174, %v190
    %v194 = vsub.f32 %v179, %v190
    %v195 = vmul.f32 %v191, 1.442695
    %v196 = vpow.pop %v195
    %v197 = vmul.f32 %v192, 1.442695
    %v198 = vpow.pop %v197
    %v199 = vmul.f32 %v193, 1.442695
    %v200 = vpow.pop %v199
    %v201 = vmul.f32 %v194, 1.442695
    %v202 = vpow.pop %v201
    %v203 = vld [vmem:[#allocation5] sm:$0xff]
    %v204 = vld [vmem:[#allocation5 + $0x8] sm:$0xff]
    %v205 = vld [vmem:[#allocation5 + $0x10] sm:$0xff]
    %v206 = vld [vmem:[#allocation5 + $0x18] sm:$0xff]
    %v208 = vsel %vm84, %v203, 0
    %v211 = vsel %vm84, %v204, 0
    %v214 = vsel %vm84, %v205, 0
    %v217 = vsel %vm84, %v206, 0
    %219 = vmatprep.subr.mxu0 0.0
    %220 = vmatpush1.msra.mxu0 %v196
    %221 = vmatprep.subr.mxu0 0.0
    %222 = vmatpush1.msra.mxu0 %v198
    %223 = vmatprep.subr.mxu0 0.0
    %224 = vmatpush1.msra.mxu0 %v200
    %225 = vmatprep.subr.mxu0 0.0
    %226 = vmatpush1.msra.mxu0 %v202
    %227 = vmatprep.subr.mxu0 0.0
    %228 = vmatpush1.msra.mxu0 0.0
    %229 = vmatprep.subr.mxu0 0.0
    %230 = vmatpush1.msra.mxu0 0.0
    %231 = vmatprep.subr.mxu0 0.0
    %232 = vmatpush1.msra.mxu0 0.0
    %233 = vmatprep.subr.mxu0 0.0
    %234 = vmatpush1.msra.mxu0 0.0
    %235 = vmatprep.subr.mxu0 0.0
    %236 = vmatpush1.msra.mxu0 0.0
    %237 = vmatprep.subr.mxu0 0.0
    %238 = vmatpush1.msra.mxu0 0.0
    %239 = vmatprep.subr.mxu0 0.0
    %240 = vmatpush1.msra.mxu0 0.0
    %241 = vmatprep.subr.mxu0 0.0
    %242 = vmatpush1.msra.mxu0 0.0
    %243 = vmatprep.subr.mxu0 0.0
    %244 = vmatpush1.msra.mxu0 0.0
    %245 = vmatprep.subr.mxu0 0.0
    %246 = vmatpush1.msra.mxu0 0.0
    %247 = vmatprep.subr.mxu0 0.0
    %248 = vmatpush1.msra.mxu0 0.0
    %249 = vmatprep.subr.mxu0 0.0
    %250 = vmatpush1.msra.mxu0 0.0
    %251 = vmatprep.subr.mxu0 0.0
    %252 = vmatpush1.msra.mxu0 0.0
    %253 = vmatprep.subr.mxu0 0.0
    %254 = vmatpush1.msra.mxu0 0.0
    %255 = vmatprep.subr.mxu0 0.0
    %256 = vmatpush1.msra.mxu0 0.0
    %257 = vmatprep.subr.mxu0 0.0
    %258 = vmatpush1.msra.mxu0 0.0
    %259 = vmatprep.subr.mxu0 0.0
    %260 = vmatpush1.msra.mxu0 0.0
    %261 = vmatprep.subr.mxu0 0.0
    %262 = vmatpush1.msra.mxu0 0.0
    %263 = vmatprep.subr.mxu0 0.0
    %264 = vmatpush1.msra.mxu0 0.0
    %265 = vmatprep.subr.mxu0 0.0
    %266 = vmatpush1.msra.mxu0 0.0
    %267 = vmatprep.subr.mxu0 0.0
    %268 = vmatpush1.msra.mxu0 0.0
    %269 = vmatprep.subr.mxu0 0.0
    %270 = vmatpush1.msra.mxu0 0.0
    %271 = vmatprep.subr.mxu0 0.0
    %272 = vmatpush1.msra.mxu0 0.0
    %273 = vmatprep.subr.mxu0 0.0
    %274 = vmatpush1.msra.mxu0 0.0
    %275 = vmatprep.subr.mxu0 0.0
    %276 = vmatpush1.msra.mxu0 0.0
    %277 = vmatprep.subr.mxu0 0.0
    %278 = vmatpush1.msra.mxu0 0.0
    %279 = vmatprep.subr.mxu0 0.0
    %280 = vmatpush1.msra.mxu0 0.0
    %281 = vmatprep.subr.mxu0 0.0
    %282 = vmatpush1.msra.mxu0 0.0
    %283 = vmatprep.mubr.f32.mxu0 0.0
    %284 = vmatmul.mubr.f32.gmra.mrb[0].mxu0 %v208
    %v285 = vpop.f32.mrb[0].mxu0
    %v286 = vadd.f32 0.0, %v285
    %v287 = vpop.f32.mrb[0].mxu0
    %288 = vmatprep.mubr.f32.mxu0 0.0
    %289 = vmatmul.mubr.f32.gmra.mrb[0].mxu0 %v211
    %v290 = vpop.f32.mrb[0].mxu0
    %v291 = vadd.f32 0.0, %v290
    %v292 = vpop.f32.mrb[0].mxu0
    %293 = vmatprep.mubr.f32.mxu0 0.0
    %294 = vmatmul.mubr.f32.gmra.mrb[0].mxu0 %v214
    %v295 = vpop.f32.mrb[0].mxu0
    %v296 = vadd.f32 0.0, %v295
    %v297 = vpop.f32.mrb[0].mxu0
    %298 = vmatprep.mubr.f32.mxu0 0.0
    %299 = vmatmul.mubr.f32.gmra.mrb[0].mxu0 %v217
    %v300 = vpop.f32.mrb[0].mxu0
    %v301 = vadd.f32 0.0, %v300
    %v302 = vpop.f32.mrb[0].mxu0
    %303 = vdwg.mxu0
    %v304 = vrcp.pop %v286
    %v305 = vrcp.pop %v291
    %v306 = vrcp.pop %v296
    %v307 = vrcp.pop %v301
    %v308 = vmul.f32 %v196, %v304
    %v309 = vmul.f32 %v198, %v305
    %v310 = vmul.f32 %v200, %v306
    %v311 = vmul.f32 %v202, %v307
    %v312 = vld [vmem:[#allocation2] sm:$0xff]
    %v313 = vld [vmem:[#allocation2 + $0x8] sm:$0xff]
    %v314 = vld [vmem:[#allocation2 + $0x10] sm:$0xff]
    %v315 = vld [vmem:[#allocation2 + $0x18] sm:$0xff]
    %v316 = vld [vmem:[%s4] sm:$0xff]
    %v317 = vld [vmem:[%s4 + $0x8] sm:$0xff]
    %v318 = vld [vmem:[%s4 + $0x10] sm:$0xff]
    %v319 = vld [vmem:[%s4 + $0x18] sm:$0xff]
    %321 = vset.pattern.permute.xlu0 0
    %322 = vperm.xlu0 %321, %v316
    %v323 = vpop.permute.xlu0 %322
    %326 = vset.pattern.permute.xlu0 0
    %327 = vperm.xlu0 %326, %v317
    %v328 = vpop.permute.xlu0 %327
    %331 = vset.pattern.permute.xlu0 0
    %332 = vperm.xlu0 %331, %v318
    %v333 = vpop.permute.xlu0 %332
    %336 = vset.pattern.permute.xlu0 0
    %337 = vperm.xlu0 %336, %v319
    %v338 = vpop.permute.xlu0 %337
    %v341 = vsel %vm84, %v312, 0
    %v344 = vsel %vm84, %v313, 0
    %v347 = vsel %vm84, %v314, 0
    %v350 = vsel %vm84, %v315, 0
    %352 = vmatprep.subr.mxu0 0.0
    %353 = vmatpush1.msra.mxu0 %v308
    %354 = vmatprep.subr.mxu0 0.0
    %355 = vmatpush1.msra.mxu0 %v309
    %356 = vmatprep.subr.mxu0 0.0
    %357 = vmatpush1.msra.mxu0 %v310
    %358 = vmatprep.subr.mxu0 0.0
    %359 = vmatpush1.msra.mxu0 %v311
    %360 = vmatprep.subr.mxu0 0.0
    %361 = vmatpush1.msra.mxu0 0.0
    %362 = vmatprep.subr.mxu0 0.0
    %363 = vmatpush1.msra.mxu0 0.0
    %364 = vmatprep.subr.mxu0 0.0
    %365 = vmatpush1.msra.mxu0 0.0
    %366 = vmatprep.subr.mxu0 0.0
    %367 = vmatpush1.msra.mxu0 0.0
    %368 = vmatprep.subr.mxu0 0.0
    %369 = vmatpush1.msra.mxu0 0.0
    %370 = vmatprep.subr.mxu0 0.0
    %371 = vmatpush1.msra.mxu0 0.0
    %372 = vmatprep.subr.mxu0 0.0
    %373 = vmatpush1.msra.mxu0 0.0
    %374 = vmatprep.subr.mxu0 0.0
    %375 = vmatpush1.msra.mxu0 0.0
    %376 = vmatprep.subr.mxu0 0.0
    %377 = vmatpush1.msra.mxu0 0.0
    %378 = vmatprep.subr.mxu0 0.0
    %379 = vmatpush1.msra.mxu0 0.0
    %380 = vmatprep.subr.mxu0 0.0
    %381 = vmatpush1.msra.mxu0 0.0
    %382 = vmatprep.subr.mxu0 0.0
    %383 = vmatpush1.msra.mxu0 0.0
    %384 = vmatprep.subr.mxu0 0.0
    %385 = vmatpush1.msra.mxu0 0.0
    %386 = vmatprep.subr.mxu0 0.0
    %387 = vmatpush1.msra.mxu0 0.0
    %388 = vmatprep.subr.mxu0 0.0
    %389 = vmatpush1.msra.mxu0 0.0
    %390 = vmatprep.subr.mxu0 0.0
    %391 = vmatpush1.msra.mxu0 0.0
    %392 = vmatprep.subr.mxu0 0.0
    %393 = vmatpush1.msra.mxu0 0.0
    %394 = vmatprep.subr.mxu0 0.0
    %395 = vmatpush1.msra.mxu0 0.0
    %396 = vmatprep.subr.mxu0 0.0
    %397 = vmatpush1.msra.mxu0 0.0
    %398 = vmatprep.subr.mxu0 0.0
    %399 = vmatpush1.msra.mxu0 0.0
    %400 = vmatprep.subr.mxu0 0.0
    %401 = vmatpush1.msra.mxu0 0.0
    %402 = vmatprep.subr.mxu0 0.0
    %403 = vmatpush1.msra.mxu0 0.0
    %404 = vmatprep.subr.mxu0 0.0
    %405 = vmatpush1.msra.mxu0 0.0
    %406 = vmatprep.subr.mxu0 0.0
    %407 = vmatpush1.msra.mxu0 0.0
    %408 = vmatprep.subr.mxu0 0.0
    %409 = vmatpush1.msra.mxu0 0.0
    %410 = vmatprep.subr.mxu0 0.0
    %411 = vmatpush1.msra.mxu0 0.0
    %412 = vmatprep.subr.mxu0 0.0
    %413 = vmatpush1.msra.mxu0 0.0
    %414 = vmatprep.subr.mxu0 0.0
    %415 = vmatpush1.msra.mxu0 0.0
    %416 = vmatprep.mubr.f32.mxu0 0.0
    %417 = vmatmul.mubr.f32.gmra.mrb[0].mxu0 %v341
    %v418 = vpop.f32.mrb[0].mxu0
    %v419 = vadd.f32 %v323, %v418
    %v420 = vpop.f32.mrb[0].mxu0
    %421 = vmatprep.mubr.f32.mxu0 0.0
    %422 = vmatmul.mubr.f32.gmra.mrb[0].mxu0 %v344
    %v423 = vpop.f32.mrb[0].mxu0
    %v424 = vadd.f32 %v328, %v423
    %v425 = vpop.f32.mrb[0].mxu0
    %426 = vmatprep.mubr.f32.mxu0 0.0
    %427 = vmatmul.mubr.f32.gmra.mrb[0].mxu0 %v347
    %v428 = vpop.f32.mrb[0].mxu0
    %v429 = vadd.f32 %v333, %v428
    %v430 = vpop.f32.mrb[0].mxu0
    %431 = vmatprep.mubr.f32.mxu0 0.0
    %432 = vmatmul.mubr.f32.gmra.mrb[0].mxu0 %v350
    %v433 = vpop.f32.mrb[0].mxu0
    %v434 = vadd.f32 %v338, %v433
    %v435 = vpop.f32.mrb[0].mxu0
    %436 = vdwg.mxu0
    %437 = vst [vmem:[#allocation7] sm:$0xff] %v419
    %438 = vst [vmem:[#allocation7 + $0x8] sm:$0xff] %v424
    %439 = vst [vmem:[#allocation7 + $0x10] sm:$0xff] %v429
    %440 = vst [vmem:[#allocation7 + $0x18] sm:$0xff] %v434
    // Predicated region
    $region34: #{tpu_custom_call.1} parent=1 // pred_check
      _
    $region35: #{tpu_custom_call.1} parent=1 // pred_check_branch
      %442 = sbr.rel (0) target = $region37
    $region36: #{tpu_custom_call.1} parent=1 // pred_region
      %s444 = ssub.s32 512, 512
      %445 = vsyncadd [#allocation4], %s444
      %s446 = sshll.u32 [#allocation7], 4
      %s447 = int_to_ptr.vmem [resolvable:$true] %s446
      %452 = dma.vmem_to_hbm [thread:$0]  %s447, 512, %s6, [#allocation4], 128, 128, 8
    $region37: #{tpu_custom_call.1} parent=1 // pred_fallthru
      _
    // Predicated region
    $region38: #{tpu_custom_call.1} parent=1 // pred_check
      _
    $region39: #{tpu_custom_call.1} parent=1 // pred_check_branch
      %454 = sbr.rel (0) target = $region41
    $region40: #{tpu_custom_call.1} parent=1 // pred_region
      %455 = dma.done [#allocation4], 512
    $region41: #{tpu_custom_call.1} parent=1 // pred_fallthru
      _
    %456 = vsyncpa [#allocation3], 1
    %457 = vsyncpa [#allocation6], 1
    %458 = vsyncpa [#allocation4], 1

</llo_original>
